<compile_context>
chip_gen: v6e
topology: v6e:2x2x1
jax: 0.10.0
libtpu: 0.0.40
codegen_flags: <defaults>
</compile_context>

<pallas_src>
import functools

import numpy as np
import jax
import jax.numpy as jnp
from jax.experimental import pallas as pl
from jax.experimental.pallas import tpu as pltpu


def _round_up(x, m):
    return ((x + m - 1) // m) * m


def _pick_tm(n, *, target_tiles=8, tm_min=128, tm_max=1024):
    """Row-tile size: as large as possible for big N (fewer grid steps, HBM
    roofline), but keep roughly >= target_tiles row tiles so the 'parallel'
    grid axis can be sharded over 2 TensorCores (v7x) with pipeline depth."""
    tm = _round_up(max(1, -(-n // target_tiles)), 128)
    return int(max(tm_min, min(tm_max, tm)))


def subm_conv_bn_relu_kernel(c_out, g_ref, w_ref, scale_ref, bias_ref, o_ref):
    """One row tile.

    g_ref:     (tm, KC_pad)       bf16  im2col rows (K*C_in folded, zero-padded)
    w_ref:     (KC_pad, 128)      bf16  folded conv weight (grid-invariant)
    scale_ref: (1, c_out)         f32   fused BN scale (gamma / sqrt(var+eps))
    bias_ref:  (1, c_out)         f32   fused BN shift (incl. conv bias)
    o_ref:     (tm, c_out)        bf16  unpadded output tile (16 B/voxel writes)
    """
    acc = jnp.dot(g_ref[...], w_ref[...],
                  preferred_element_type=jnp.float32)          # (tm, 128) f32
    y = acc[:, :c_out] * scale_ref[...] + bias_ref[...]        # (tm, c_out) f32
    o_ref[...] = jnp.maximum(y, 0.0).astype(o_ref.dtype)       # bf16 store


def sparse_conv_block_pallas(gathered2d, weight2d, fused_scale, fused_bias, *, tm):
    """gathered2d: [N_pad, KC_pad] bf16, weight2d: [KC_pad, Cout_mxu] bf16,
    fused_scale/fused_bias: [1, C_out] f32.  Returns [N_pad, C_out] bf16."""
    n_pad, kc_pad = gathered2d.shape
    c_out_mxu = weight2d.shape[-1]          # MXU-padded weight width (128)
    c_out = fused_scale.shape[-1]           # real channel count stored to HBM
    assert n_pad % tm == 0 and kc_pad % 128 == 0 and c_out_mxu % 128 == 0
    grid = (n_pad // tm,)

    cost = pl.CostEstimate(
        flops=2 * n_pad * kc_pad * c_out_mxu,
        transcendentals=0,
        bytes_accessed=(n_pad * kc_pad * 2          # im2col read (bf16)
                        + kc_pad * c_out_mxu * 2    # weight (bf16, once)
                        + 2 * c_out * 4             # fused scale/shift (f32)
                        + n_pad * c_out * 2),       # output write (bf16)
    )

    return pl.pallas_call(
        functools.partial(subm_conv_bn_relu_kernel, c_out),
        out_shape=jax.ShapeDtypeStruct((n_pad, c_out), jnp.bfloat16),
        grid_spec=pltpu.PrefetchScalarGridSpec(
            num_scalar_prefetch=0,
            grid=grid,
            in_specs=[
                pl.BlockSpec((tm, kc_pad), lambda i: (i, 0)),
                # grid-invariant blocks: weight + fused BN params stay resident
                pl.BlockSpec((kc_pad, c_out_mxu), lambda i: (0, 0)),
                pl.BlockSpec((1, c_out), lambda i: (0, 0)),
                pl.BlockSpec((1, c_out), lambda i: (0, 0)),
            ],
            out_specs=pl.BlockSpec((tm, c_out), lambda i: (i, 0)),
        ),
        compiler_params=pltpu.CompilerParams(
            dimension_semantics=("parallel",),
            vmem_limit_bytes=32 * 1024 * 1024),
        cost_estimate=cost,
    )(gathered2d, weight2d, fused_scale, fused_bias)


def build_rulebook(indices_np, spatial_shape, batch_size, kernel_size=3, dilation=1):
    """For each active voxel and each kernel offset, return the row index of the
    neighbor voxel, or sentinel N (a zero row) if the neighbor is not active."""
    N = indices_np.shape[0]
    D, H, W = spatial_shape
    lut = -np.ones((batch_size, D, H, W), dtype=np.int32)
    lut[indices_np[:, 0], indices_np[:, 1], indices_np[:, 2], indices_np[:, 3]] = (
        np.arange(N, dtype=np.int32))
    r = kernel_size // 2
    offsets = [(dz * dilation, dy * dilation, dx * dilation)
               for dz in range(-r, r + 1)
               for dy in range(-r, r + 1)
               for dx in range(-r, r + 1)]
    K = len(offsets)
    nbr = np.full((N, K), N, dtype=np.int32)
    for k, (dz, dy, dx) in enumerate(offsets):
        z = indices_np[:, 1] + dz
        y = indices_np[:, 2] + dy
        x = indices_np[:, 3] + dx
        valid = (z >= 0) & (z < D) & (y >= 0) & (y < H) & (x >= 0) & (x < W)
        col = np.full(N, N, dtype=np.int32)
        hit = lut[indices_np[valid, 0], z[valid], y[valid], x[valid]]
        col[valid] = np.where(hit >= 0, hit, N)
        nbr[:, k] = col
    return nbr


def sparse_conv_block_forward(features, indices_np, spatial_shape, batch_size,
                              weight, conv_bias, gamma, beta, run_mean, run_var,
                              kernel_size=3, dilation=1, eps=1e-5, tm=None):
    """Full SparseConvBlock forward (SubMConv3d + BN(eval) + ReLU).
    Returns new features [N, C_out] (bf16); output indices == input indices
    (submanifold).  Also returns the padded bf16 operands + fused params
    (for the reference check)."""
    N, c_in = features.shape
    K = weight.shape[0]
    c_out = weight.shape[-1]

    kc = K * c_in
    kc_pad = _round_up(kc, 128)           # 27*4 = 108 -> 128-deep MXU contraction
    c_out_mxu = _round_up(c_out, 128)     # MXU-padded weight width (compute only)
    if tm is None:
        tm = _pick_tm(N)
    n_pad = _round_up(max(N, 1), tm)

    # rulebook gather (im2col for sparse voxels) -- host/XLA-side index plumbing
    # TODO(synk): move this gather in-kernel (scalar-prefetched nbr indices).
    nbr = build_rulebook(indices_np, spatial_shape, batch_size, kernel_size, dilation)
    feat_pad = jnp.concatenate(
        [features, jnp.zeros((1, c_in), features.dtype)], axis=0)      # row N = zeros
    gathered = feat_pad[jnp.asarray(nbr)]                              # [N, K, C_in]
    g2d = gathered.reshape(N, kc)                                      # contiguous fold
    g2d = jnp.pad(g2d, ((0, n_pad - N), (0, kc_pad - kc))).astype(jnp.bfloat16)

    w2d = weight.reshape(kc, c_out)
    w2d = jnp.pad(w2d, ((0, kc_pad - kc), (0, c_out_mxu - c_out))).astype(jnp.bfloat16)

    # fold conv bias + eval-mode BatchNorm1d into a single scale/shift (f32)
    scale = gamma / jnp.sqrt(run_var + eps)
    shift = beta + (conv_bias - run_mean) * scale
    fused_scale = scale.reshape(1, c_out).astype(jnp.float32)
    fused_bias = shift.reshape(1, c_out).astype(jnp.float32)

    out_pad = sparse_conv_block_pallas(g2d, w2d, fused_scale, fused_bias, tm=tm)
    # NOTE: padded rows >= N contain relu(fused_bias) != 0; always slice them off.
    return out_pad[:N], g2d, w2d, fused_scale, fused_bias


if __name__ == "__main__":
    # small synthetic sparse tensor
    batch_size = 2
    spatial_shape = (16, 16, 16)      # (D, H, W)
    c_in, c_out = 4, 8
    kernel_size, dilation = 3, 1
    K = kernel_size ** 3
    n_active = 600                    # -> tm = 128, n_pad = 640, grid = (5,)

    key = jax.random.PRNGKey(0)
    k_coord, k_feat, k_w, k_b, k_g, k_be, k_m, k_v = jax.random.split(key, 8)

    # unique active voxel coordinates (b, z, y, x)
    D, H, W = spatial_shape
    flat = jax.random.choice(k_coord, batch_size * D * H * W, shape=(n_active,),
                             replace=False)
    flat_np = np.array(flat, dtype=np.int64)
    b = flat_np // (D * H * W)
    rem = flat_np % (D * H * W)
    z = rem // (H * W)
    y = (rem % (H * W)) // W
    x = rem % W
    indices_np = np.stack([b, z, y, x], axis=1).astype(np.int32)       # [N, 4]

    features = jax.random.normal(k_feat, (n_active, c_in), jnp.float32)

    # deterministic parameter init (shapes from the module's __init__)
    weight = 0.1 * jax.random.normal(k_w, (K, c_in, c_out), jnp.float32)
    conv_bias = 0.1 * jax.random.normal(k_b, (c_out,), jnp.float32)
    gamma = 1.0 + 0.1 * jax.random.normal(k_g, (c_out,), jnp.float32)
    beta = 0.1 * jax.random.normal(k_be, (c_out,), jnp.float32)
    run_mean = 0.1 * jax.random.normal(k_m, (c_out,), jnp.float32)
    run_var = jax.random.uniform(k_v, (c_out,), jnp.float32, 0.5, 1.5)

    out, g2d, w2d, fused_scale, fused_bias = sparse_conv_block_forward(
        features, indices_np, spatial_shape, batch_size,
        weight, conv_bias, gamma, beta, run_mean, run_var,
        kernel_size=kernel_size, dilation=dilation)
    out = jax.block_until_ready(out)

    # pure-JAX reference with matching numerics (bf16 operands, f32 accumulation,
    # f32 epilogue).  Kernel output is bf16 -> compare with bf16-level tolerance.
    ref = jnp.dot(g2d[:n_active].astype(jnp.float32), w2d.astype(jnp.float32))
    ref = jnp.maximum(ref[:, :c_out] * fused_scale + fused_bias, 0.0)
    out_f32 = np.asarray(out.astype(jnp.float32))
    np.testing.assert_allclose(out_f32, np.asarray(ref), atol=2e-2, rtol=2e-2)

    print("KERNEL_OK")
</pallas_src>

<mosaic_0001>
module attributes {stable_mosaic.version = 11 : i64} {
  func.func @subm_conv_bn_relu_kernel(%arg0: i32, %arg1: memref<128x128xbf16, #tpu.memory_space<vmem>>, %arg2: memref<128x128xbf16, #tpu.memory_space<vmem>>, %arg3: memref<1x8xf32, #tpu.memory_space<vmem>>, %arg4: memref<1x8xf32, #tpu.memory_space<vmem>>, %arg5: memref<128x8xbf16, #tpu.memory_space<vmem>>) attributes {dimension_semantics = [#tpu.dimension_semantics<parallel>], iteration_bounds = array<i64: 5>, scalar_prefetch = 0 : i64, scratch_operands = 0 : i64, tpu.core_type = #tpu.core_type<tc>, window_params = [{transform_indices = @transform_0, window_bounds = array<i64: 128, 128>}, {pipeline_mode = #tpu.pipeline_mode<synchronous>, transform_indices = @transform_1, window_bounds = array<i64: 128, 128>}, {pipeline_mode = #tpu.pipeline_mode<synchronous>, transform_indices = @transform_2, window_bounds = array<i64: 1, 8>}, {pipeline_mode = #tpu.pipeline_mode<synchronous>, transform_indices = @transform_3, window_bounds = array<i64: 1, 8>}, {transform_indices = @transform_4, window_bounds = array<i64: 128, 8>}]} {
    %c0 = arith.constant 0 : index
    %c0_0 = arith.constant 0 : index
    %0 = vector.load %arg1[%c0, %c0_0] : memref<128x128xbf16, #tpu.memory_space<vmem>>, vector<128x128xbf16>
    %c0_1 = arith.constant 0 : index
    %c0_2 = arith.constant 0 : index
    %1 = vector.load %arg2[%c0_1, %c0_2] : memref<128x128xbf16, #tpu.memory_space<vmem>>, vector<128x128xbf16>
    %cst = arith.constant dense<0.000000e+00> : vector<128x128xf32>
    %2 = tpu.matmul %0, %1, %cst {dimension_numbers = #tpu.dot_dimension_numbers<[1], [0], [0], [1], [0, 0, 1, 1], [], []>} : vector<128x128xbf16>, vector<128x128xbf16>, vector<128x128xf32> -> vector<128x128xf32>
    %3 = vector.extract_strided_slice %2 {offsets = [0, 0], sizes = [128, 8], strides = [1, 1]} : vector<128x128xf32> to vector<128x8xf32>
    %c0_3 = arith.constant 0 : index
    %c0_4 = arith.constant 0 : index
    %4 = vector.load %arg3[%c0_3, %c0_4] : memref<1x8xf32, #tpu.memory_space<vmem>>, vector<1x8xf32>
    %5 = vector.broadcast %4 : vector<1x8xf32> to vector<128x8xf32>
    %6 = arith.mulf %3, %5 : vector<128x8xf32>
    %c0_5 = arith.constant 0 : index
    %c0_6 = arith.constant 0 : index
    %7 = vector.load %arg4[%c0_5, %c0_6] : memref<1x8xf32, #tpu.memory_space<vmem>>, vector<1x8xf32>
    %8 = vector.broadcast %7 : vector<1x8xf32> to vector<128x8xf32>
    %9 = arith.addf %6, %8 : vector<128x8xf32>
    %cst_7 = arith.constant 0.000000e+00 : f32
    %10 = vector.broadcast %cst_7 : f32 to vector<128x8xf32>
    %11 = arith.maximumf %9, %10 : vector<128x8xf32>
    %12 = arith.truncf %11 : vector<128x8xf32> to vector<128x8xbf16>
    %c0_8 = arith.constant 0 : index
    %c0_9 = arith.constant 0 : index
    %13 = vector.load %arg5[%c0_8, %c0_9] : memref<128x8xbf16, #tpu.memory_space<vmem>>, vector<128x8xbf16>
    tpu.vector_store %arg5[%c0_8, %c0_9], %12 {strides = array<i32>} : memref<128x8xbf16, #tpu.memory_space<vmem>>, vector<128x8xbf16>,
    return
  }
  func.func @transform_0(%arg0: i32) -> (i32, i32) {
    %c0_i32 = arith.constant 0 : i32
    %c0_i32_0 = arith.constant 0 : i32
    return %arg0, %c0_i32 : i32, i32
  }
  func.func @transform_1(%arg0: i32) -> (i32, i32) {
    %c0_i32 = arith.constant 0 : i32
    %c0_i32_0 = arith.constant 0 : i32
    %c0_i32_1 = arith.constant 0 : i32
    return %c0_i32, %c0_i32_0 : i32, i32
  }
  func.func @transform_2(%arg0: i32) -> (i32, i32) {
    %c0_i32 = arith.constant 0 : i32
    %c0_i32_0 = arith.constant 0 : i32
    %c0_i32_1 = arith.constant 0 : i32
    return %c0_i32, %c0_i32_0 : i32, i32
  }
  func.func @transform_3(%arg0: i32) -> (i32, i32) {
    %c0_i32 = arith.constant 0 : i32
    %c0_i32_0 = arith.constant 0 : i32
    %c0_i32_1 = arith.constant 0 : i32
    return %c0_i32, %c0_i32_0 : i32, i32
  }
  func.func @transform_4(%arg0: i32) -> (i32, i32) {
    %c0_i32 = arith.constant 0 : i32
    %c0_i32_0 = arith.constant 0 : i32
    return %arg0, %c0_i32 : i32, i32
  }
}

</mosaic_0001>

<llo_original>
// kernel: tpu_custom_call.1
$region0: #{tpu_custom_call.1}
  #allocation0 [shape = 'u32[]', space=smem, size = 0x4, offset = 0x4, fixed_abs, tag = 'smem constant byte address 0x4 - core index']
  #allocation1 [shape = 'u32[144,128]{1,0:T(1,128)}', space=vmem, size = 0x12000, scoped, tag = 'internal scratch']
  %s0 = inlined_call_operand.hbm [shape: bf16[640,128], index: 0, kind: input, shape index: {}]
  %s1 = inlined_call_operand.hbm [shape: bf16[128,128], index: 1, kind: input, shape index: {}]
  %s2 = inlined_call_operand.vmem [shape: f32[1,8], index: 2, kind: input, shape index: {}]
  %s3 = inlined_call_operand.vmem [shape: f32[1,8], index: 3, kind: input, shape index: {}]
  %s4 = inlined_call_operand.vmem [shape: bf16[640,8], index: 4, kind: output, shape index: {}]
  %s5 = sld [smem:[#allocation0]]
  $region57: #{tpu_custom_call.1} parent=0
    _
  %s7 = ssub.s32 1, %s5
  %s8 = scalar_select 0, %s7, %s5
  $region1: #{tpu_custom_call.1} parent=0
    #allocation2 [shape = 'u8[65536]{0}', space=vmem, size = 0x10000, scoped, tag = 'input window, operand 0']
    #allocation3 [shape = 's32[2]{0}', space=sflag, size = 0x8, scoped, tag = 'scoped memory for tpu_custom_call.1']
    #allocation4 [shape = 'u8[32768]{0}', space=vmem, size = 0x8000, scoped, tag = 'input window, operand 1, single buffered']
    #allocation5 [shape = 's32[1]{0}', space=sflag, size = 0x4, scoped, tag = 'scoped memory for tpu_custom_call.1']
    %9 = vsyncpa [#allocation3], 0
    %s10 = scalar_lea.sflag [#allocation3], 1
    %11 = vsyncpa %s10, 0
    %12 = vsyncpa [#allocation5], 0
    loop: start=0, step=1, limit=7
    $region2: #{tpu_custom_call.1} parent=1 // loop_pre_header
      _
    $region3: #{tpu_custom_call.1} parent=1 // loop_header
      %s14 = sphi 0, %s18
      %p15 = scmp.ge.s32.totalorder %s14, 7
      %s24 = sphi 0, %s26
      %s27 = sphi 0, %s24
      %s28 = sphi 0, %s27
      %s44 = sphi 0, %s28
      %s48 = sphi 0, %s48
      %s50 = sphi 0, %s48
      %s51 = sphi 0, %s50
      %s65 = sphi 0, %s51
      %s69 = sphi 0, %s69
      %s71 = sphi 0, %s69
      %s72 = sphi 0, %s71
      %s86 = sphi 0, %s72
      %s90 = sphi 0, %s90
      %s92 = sphi 0, %s90
      %s93 = sphi 0, %s92
      %s107 = sphi 0, %s93
      %s113 = sphi 0, %s115
      %s116 = sphi 0, %s113
      %s117 = sphi 0, %s116
      %s133 = sphi 0, %s117
    $region4: #{tpu_custom_call.1} parent=1 // loop_header_branch
      %17 = sbr.rel (%p15) target = $region8
    $region5: #{tpu_custom_call.1} parent=1 // loop_body
      %s19 = ssub.s32 %s14, 1
      %s20 = ssub.s32 %s14, 2
      %s21 = sadd.s32 %s14, 1
      %s22 = ssub.s32 %s14, %s21
      %p23 = scmp.eq.s32.totalorder %s22, 0
      %s25 = sadd.s32 %s24, 1
      %s26 = scalar_select %p23, %s24, %s25
      %p29 = pneg %p23
      %p30 = scmp.eq.s32.totalorder %s14, 4
      %p31 = por %p29, %p30
      %p32 = scmp.ne.s32.totalorder %s24, %s27
      %p33 = scmp.eq.s32.totalorder %s14, 0
      %p34 = por %p32, %p33
      %p35 = scmp.ne.s32.totalorder %s24, %s27
      %p36 = scmp.eq.s32.totalorder %s19, 4
      %p37 = por %p35, %p36
      %p38 = scmp.ne.s32.totalorder %s27, %s28
      %p39 = scmp.eq.s32.totalorder %s19, 0
      %p40 = por %p38, %p39
      %p41 = scmp.ne.s32.totalorder %s27, %s28
      %p42 = scmp.eq.s32.totalorder %s20, 4
      %p43 = por %p41, %p42
      %p45 = scmp.ne.s32.totalorder %s28, %s44
      %p46 = scmp.eq.s32.totalorder %s20, 0
      %p47 = por %p45, %p46
      %s49 = sadd.s32 %s48, 1
      %p52 = scmp.eq.s32.totalorder %s14, 4
      %p53 = scmp.ne.s32.totalorder %s48, %s50
      %p54 = scmp.eq.s32.totalorder %s14, 0
      %p55 = por %p53, %p54
      %p56 = scmp.ne.s32.totalorder %s48, %s50
      %p57 = scmp.eq.s32.totalorder %s19, 4
      %p58 = por %p56, %p57
      %p59 = scmp.ne.s32.totalorder %s50, %s51
      %p60 = scmp.eq.s32.totalorder %s19, 0
      %p61 = por %p59, %p60
      %p62 = scmp.ne.s32.totalorder %s50, %s51
      %p63 = scmp.eq.s32.totalorder %s20, 4
      %p64 = por %p62, %p63
      %p66 = scmp.ne.s32.totalorder %s51, %s65
      %p67 = scmp.eq.s32.totalorder %s20, 0
      %p68 = por %p66, %p67
      %s70 = sadd.s32 %s69, 1
      %p73 = scmp.eq.s32.totalorder %s14, 4
      %p74 = scmp.ne.s32.totalorder %s69, %s71
      %p75 = scmp.eq.s32.totalorder %s14, 0
      %p76 = por %p74, %p75
      %p77 = scmp.ne.s32.totalorder %s69, %s71
      %p78 = scmp.eq.s32.totalorder %s19, 4
      %p79 = por %p77, %p78
      %p80 = scmp.ne.s32.totalorder %s71, %s72
      %p81 = scmp.eq.s32.totalorder %s19, 0
      %p82 = por %p80, %p81
      %p83 = scmp.ne.s32.totalorder %s71, %s72
      %p84 = scmp.eq.s32.totalorder %s20, 4
      %p85 = por %p83, %p84
      %p87 = scmp.ne.s32.totalorder %s72, %s86
      %p88 = scmp.eq.s32.totalorder %s20, 0
      %p89 = por %p87, %p88
      %s91 = sadd.s32 %s90, 1
      %p94 = scmp.eq.s32.totalorder %s14, 4
      %p95 = scmp.ne.s32.totalorder %s90, %s92
      %p96 = scmp.eq.s32.totalorder %s14, 0
      %p97 = por %p95, %p96
      %p98 = scmp.ne.s32.totalorder %s90, %s92
      %p99 = scmp.eq.s32.totalorder %s19, 4
      %p100 = por %p98, %p99
      %p101 = scmp.ne.s32.totalorder %s92, %s93
      %p102 = scmp.eq.s32.totalorder %s19, 0
      %p103 = por %p101, %p102
      %p104 = scmp.ne.s32.totalorder %s92, %s93
      %p105 = scmp.eq.s32.totalorder %s20, 4
      %p106 = por %p104, %p105
      %p108 = scmp.ne.s32.totalorder %s93, %s107
      %p109 = scmp.eq.s32.totalorder %s20, 0
      %p110 = por %p108, %p109
      %s111 = ssub.s32 %s14, %s21
      %p112 = scmp.eq.s32.totalorder %s111, 0
      %s114 = sadd.s32 %s113, 1
      %s115 = scalar_select %p112, %s113, %s114
      %p118 = pneg %p112
      %p119 = scmp.eq.s32.totalorder %s14, 4
      %p120 = por %p118, %p119
      %p121 = scmp.ne.s32.totalorder %s113, %s116
      %p122 = scmp.eq.s32.totalorder %s14, 0
      %p123 = por %p121, %p122
      %p124 = scmp.ne.s32.totalorder %s113, %s116
      %p125 = scmp.eq.s32.totalorder %s19, 4
      %p126 = por %p124, %p125
      %p127 = scmp.ne.s32.totalorder %s116, %s117
      %p128 = scmp.eq.s32.totalorder %s19, 0
      %p129 = por %p127, %p128
      %p130 = scmp.ne.s32.totalorder %s116, %s117
      %p131 = scmp.eq.s32.totalorder %s20, 4
      %p132 = por %p130, %p131
      %p134 = scmp.ne.s32.totalorder %s117, %s133
      %p135 = scmp.eq.s32.totalorder %s20, 0
      %p136 = por %p134, %p135
      %p137 = scmp.le.s32.totalorder 1, %s14
      %p138 = scmp.lt.s32.totalorder %s14, 6
      %p139 = pnand %p137, %p138
      %p140 = pneg %p139
      // Predicated region
      $region9: #{tpu_custom_call.1} parent=5 // pred_check
        _
      $region10: #{tpu_custom_call.1} parent=5 // pred_check_branch
        %142 = sbr.rel (%p139) target = $region12
      $region11: #{tpu_custom_call.1} parent=5 // pred_region
        %s143 = ssub.s32 %s14, 1
        // Predicated region
        $region13: #{tpu_custom_call.1} parent=11 // pred_check
          %p144 = pneg %p61
        $region14: #{tpu_custom_call.1} parent=11 // pred_check_branch
          %146 = sbr.rel (%p144) target = $region16
        $region15: #{tpu_custom_call.1} parent=11 // pred_region
          %s148 = ssub.s32 1024, 1024
          %149 = vsyncadd [#allocation5], %s148
          %s150 = sshll.u32 [#allocation4], 4
          %s151 = int_to_ptr.vmem [resolvable:$true] %s150
          %156 = dma.hbm_to_vmem [thread:$0]  %s1, 1024, %s151, [#allocation5], 64, 64, 4
        $region16: #{tpu_custom_call.1} parent=11 // pred_fallthru
          _
        // Predicated region
        $region17: #{tpu_custom_call.1} parent=11 // pred_check
          %p157 = pneg %p82
        $region18: #{tpu_custom_call.1} parent=11 // pred_check_branch
          %159 = sbr.rel (%p157) target = $region20
        $region19: #{tpu_custom_call.1} parent=11 // pred_region
          _
        $region20: #{tpu_custom_call.1} parent=11 // pred_fallthru
          _
        // Predicated region
        $region21: #{tpu_custom_call.1} parent=11 // pred_check
          %p160 = pneg %p103
        $region22: #{tpu_custom_call.1} parent=11 // pred_check_branch
          %162 = sbr.rel (%p160) target = $region24
        $region23: #{tpu_custom_call.1} parent=11 // pred_region
          _
        $region24: #{tpu_custom_call.1} parent=11 // pred_fallthru
          _
      $region12: #{tpu_custom_call.1} parent=5 // pred_fallthru
        _
      %p163 = scmp.lt.s32.totalorder %s14, 5
      // Predicated region
      $region25: #{tpu_custom_call.1} parent=5 // pred_check
        %p164 = pneg %p163
      $region26: #{tpu_custom_call.1} parent=5 // pred_check_branch
        %166 = sbr.rel (%p164) target = $region28
      $region27: #{tpu_custom_call.1} parent=5 // pred_region
        // Predicated region
        $region29: #{tpu_custom_call.1} parent=27 // pred_check
          %p167 = pneg %p34
        $region30: #{tpu_custom_call.1} parent=27 // pred_check_branch
          %169 = sbr.rel (%p167) target = $region32
        $region31: #{tpu_custom_call.1} parent=27 // pred_region
          %s170 = sand.u32 %s24, 1
          %s171 = scalar_lea.sflag [#allocation3], %s170
          %s172 = sand.u32 %s24, 1
          %s173 = smul.addr %s172, 64
          %s174 = scalar_lea.vmem [#allocation2], %s173
          %s175 = smul.u32 16, %s14
          %s177 = ssub.s32 1024, 1024
          %178 = vsyncadd %s171, %s177
          %s179 = smul.addr %s175, 64
          %s180 = scalar_lea.hbm %s0, %s179
          %s181 = sshll.u32 %s174, 4
          %s182 = int_to_ptr.vmem [resolvable:$true] %s181
          %187 = dma.hbm_to_vmem [thread:$0]  %s180, 1024, %s182, %s171, 64, 64, 4
        $region32: #{tpu_custom_call.1} parent=27 // pred_fallthru
          _
      $region28: #{tpu_custom_call.1} parent=5 // pred_fallthru
        _
      %p188 = scmp.le.s32.totalorder 1, %s14
      %p189 = scmp.lt.s32.totalorder %s14, 6
      %p190 = pnand %p188, %p189
      %p191 = pneg %p190
      // Predicated region
      $region33: #{tpu_custom_call.1} parent=5 // pred_check
        _
      $region34: #{tpu_custom_call.1} parent=5 // pred_check_branch
        %193 = sbr.rel (%p190) target = $region36
      $region35: #{tpu_custom_call.1} parent=5 // pred_region
        %s194 = ssub.s32 %s14, 1
        %s195 = sand.u32 %s27, 1
        %s196 = scalar_lea.sflag [#allocation3], %s195
        %s197 = sand.u32 %s27, 1
        %s198 = smul.addr %s197, 64
        %s199 = scalar_lea.vmem [#allocation2], %s198
        // Predicated region
        $region37: #{tpu_custom_call.1} parent=35 // pred_check
          %p200 = pneg %p40
        $region38: #{tpu_custom_call.1} parent=35 // pred_check_branch
          %202 = sbr.rel (%p200) target = $region40
        $region39: #{tpu_custom_call.1} parent=35 // pred_region
          %203 = dma.done %s196, 1024
        $region40: #{tpu_custom_call.1} parent=35 // pred_fallthru
          _
        // Predicated region
        $region41: #{tpu_custom_call.1} parent=35 // pred_check
          %p204 = pneg %p61
        $region42: #{tpu_custom_call.1} parent=35 // pred_check_branch
          %206 = sbr.rel (%p204) target = $region44
        $region43: #{tpu_custom_call.1} parent=35 // pred_region
          %207 = dma.done [#allocation5], 1024
        $region44: #{tpu_custom_call.1} parent=35 // pred_fallthru
          _
        %s208 = sand.u32 %s27, 1
        %s209 = scalar_lea.sflag [#allocation3], %s208
        %s210 = sand.u32 %s27, 1
        %s211 = smul.addr %s210, 64
        %s212 = scalar_lea.vmem [#allocation2], %s211
        %p213 = pneg %p40
        %p214 = pneg %p37
        %p215 = pneg %p61
        %p216 = pneg %p58
        %p217 = pneg %p82
        %p218 = pneg %p79
        %p219 = pneg %p103
        %p220 = pneg %p100
        %p221 = pneg %p129
        %p222 = pneg %p126
        %s223 = smul.u32 16, %s19
        %p224 = scmp.lt.s32.totalorder %s223, 79
        %s225 = scalar_select %p224, %s223, 79
        %s226 = smul.addr %s225, 4
        %s227 = scalar_lea.vmem %s4, %s226
        %s228 = smul.u32 16, %s19
        %s229 = smul.u32 16, %s19
        %p230 = scmp.lt.s32.totalorder %s229, 79
        %s231 = scalar_select %p230, %s229, 79
        %s232 = smul.addr %s231, 4
        %s233 = scalar_lea.vmem %s4, %s232
        %s234 = smul.u32 16, %s19
        %v236 = vld [vmem:[%s199] sm:$0xf]
        %v237 = vld [vmem:[%s199 + $0x4] sm:$0xf]
        %v238 = vld [vmem:[%s199 + $0x8] sm:$0xf]
        %v239 = vld [vmem:[%s199 + $0xc] sm:$0xf]
        %v240 = vld [vmem:[%s199 + $0x10] sm:$0xf]
        %v241 = vld [vmem:[%s199 + $0x14] sm:$0xf]
        %v242 = vld [vmem:[%s199 + $0x18] sm:$0xf]
        %v243 = vld [vmem:[%s199 + $0x1c] sm:$0xf]
        %v244 = vld [vmem:[%s199 + $0x20] sm:$0xf]
        %v245 = vld [vmem:[%s199 + $0x24] sm:$0xf]
        %v246 = vld [vmem:[%s199 + $0x28] sm:$0xf]
        %v247 = vld [vmem:[%s199 + $0x2c] sm:$0xf]
        %v248 = vld [vmem:[%s199 + $0x30] sm:$0xf]
        %v249 = vld [vmem:[%s199 + $0x34] sm:$0xf]
        %v250 = vld [vmem:[%s199 + $0x38] sm:$0xf]
        %v251 = vld [vmem:[%s199 + $0x3c] sm:$0xf]
        %v252 = vld [vmem:[#allocation4] sm:$0xf]
        %v253 = vld [vmem:[#allocation4 + $0x4] sm:$0xf]
        %v254 = vld [vmem:[#allocation4 + $0x8] sm:$0xf]
        %v255 = vld [vmem:[#allocation4 + $0xc] sm:$0xf]
        %v256 = vld [vmem:[#allocation4 + $0x10] sm:$0xf]
        %v257 = vld [vmem:[#allocation4 + $0x14] sm:$0xf]
        %v258 = vld [vmem:[#allocation4 + $0x18] sm:$0xf]
        %v259 = vld [vmem:[#allocation4 + $0x1c] sm:$0xf]
        %v260 = vld [vmem:[#allocation4 + $0x20] sm:$0xf]
        %v261 = vld [vmem:[#allocation4 + $0x24] sm:$0xf]
        %v262 = vld [vmem:[#allocation4 + $0x28] sm:$0xf]
        %v263 = vld [vmem:[#allocation4 + $0x2c] sm:$0xf]
        %v264 = vld [vmem:[#allocation4 + $0x30] sm:$0xf]
        %v265 = vld [vmem:[#allocation4 + $0x34] sm:$0xf]
        %v266 = vld [vmem:[#allocation4 + $0x38] sm:$0xf]
        %v267 = vld [vmem:[#allocation4 + $0x3c] sm:$0xf]
        %v284 = vunpack.c.l.b16 %v236
        %v285 = vunpack.c.l.b16 %v237
        %v286 = vunpack.c.l.b16 %v238
        %v287 = vunpack.c.l.b16 %v239
        %v288 = vunpack.c.l.b16 %v240
        %v289 = vunpack.c.l.b16 %v241
        %v290 = vunpack.c.l.b16 %v242
        %v291 = vunpack.c.l.b16 %v243
        %v292 = vunpack.c.l.b16 %v244
        %v293 = vunpack.c.l.b16 %v245
        %v294 = vunpack.c.l.b16 %v246
        %v295 = vunpack.c.l.b16 %v247
        %v296 = vunpack.c.l.b16 %v248
        %v297 = vunpack.c.l.b16 %v249
        %v298 = vunpack.c.l.b16 %v250
        %v299 = vunpack.c.l.b16 %v251
        %v300 = vpack.c.b16 %v285, %v284
        %v301 = vpack.c.b16 %v287, %v286
        %v302 = vpack.c.b16 %v289, %v288
        %v303 = vpack.c.b16 %v291, %v290
        %v304 = vpack.c.b16 %v293, %v292
        %v305 = vpack.c.b16 %v295, %v294
        %v306 = vpack.c.b16 %v297, %v296
        %v307 = vpack.c.b16 %v299, %v298
        %v332 = vunpack.c.l.b16 %v252
        %v333 = vunpack.c.l.b16 %v253
        %v334 = vunpack.c.l.b16 %v254
        %v335 = vunpack.c.l.b16 %v255
        %v336 = vunpack.c.l.b16 %v256
        %v337 = vunpack.c.l.b16 %v257
        %v338 = vunpack.c.l.b16 %v258
        %v339 = vunpack.c.l.b16 %v259
        %v340 = vunpack.c.l.b16 %v260
        %v341 = vunpack.c.l.b16 %v261
        %v342 = vunpack.c.l.b16 %v262
        %v343 = vunpack.c.l.b16 %v263
        %v344 = vunpack.c.l.b16 %v264
        %v345 = vunpack.c.l.b16 %v265
        %v346 = vunpack.c.l.b16 %v266
        %v347 = vunpack.c.l.b16 %v267
        %v348 = vpack.c.b16 %v333, %v332
        %v349 = vpack.c.b16 %v335, %v334
        %v350 = vpack.c.b16 %v337, %v336
        %v351 = vpack.c.b16 %v339, %v338
        %v352 = vpack.c.b16 %v341, %v340
        %v353 = vpack.c.b16 %v343, %v342
        %v354 = vpack.c.b16 %v345, %v344
        %v355 = vpack.c.b16 %v347, %v346
        %364 = vmatprep.subr.bf16.mxu0 0
        %365 = vmatpush1.bf16.msra.mxu0 %v355
        %366 = vmatprep.subr.bf16.mxu0 0
        %367 = vmatpush1.bf16.msra.mxu0 %v354
        %368 = vmatprep.subr.bf16.mxu0 0
        %369 = vmatpush1.bf16.msra.mxu0 %v353
        %370 = vmatprep.subr.bf16.mxu0 0
        %371 = vmatpush1.bf16.msra.mxu0 %v352
        %372 = vmatprep.subr.bf16.mxu0 0
        %373 = vmatpush1.bf16.msra.mxu0 %v351
        %374 = vmatprep.subr.bf16.mxu0 0
        %375 = vmatpush1.bf16.msra.mxu0 %v350
        %376 = vmatprep.subr.bf16.mxu0 0
        %377 = vmatpush1.bf16.msra.mxu0 %v349
        %378 = vmatprep.subr.bf16.mxu0 0
        %379 = vmatpush1.bf16.msra.mxu0 %v348
        %380 = vmatprep.subr.bf16.mxu0 0
        %381 = vmatpush2.bf16.msra.mxu0 0
        %382 = vmatprep.subr.bf16.mxu0 0
        %383 = vmatpush2.bf16.msra.mxu0 0
        %384 = vmatprep.subr.bf16.mxu0 0
        %385 = vmatpush2.bf16.msra.mxu0 0
        %386 = vmatprep.subr.bf16.mxu0 0
        %387 = vmatpush2.bf16.msra.mxu0 0
        %388 = vmatprep.subr.bf16.mxu0 0
        %389 = vmatpush2.bf16.msra.mxu0 0
        %390 = vmatprep.subr.bf16.mxu0 0
        %391 = vmatpush2.bf16.msra.mxu0 0
        %392 = vmatprep.subr.bf16.mxu0 0
        %393 = vmatpush2.bf16.msra.mxu0 0
        %394 = vmatprep.subr.bf16.mxu0 0
        %395 = vmatpush2.bf16.msra.mxu0 0
        %396 = vmatprep.mubr.bf16.mxu0 0
        %397 = vmatmul.mubr.bf16.gmra.mxu0 %v300
        %v398 = vpop.f32.mrf.mxu0
        %v399 = vadd.f32 0.0, %v398
        %v400 = vpop.f32.mrf.mxu0
        %v401 = vpop.f32.mrf.mxu0
        %v402 = vadd.f32 0.0, %v401
        %v403 = vpop.f32.mrf.mxu0
        %404 = vmatprep.mubr.bf16.mxu0 0
        %405 = vmatmul.mubr.bf16.gmra.mxu0 %v301
        %v406 = vpop.f32.mrf.mxu0
        %v407 = vadd.f32 0.0, %v406
        %v408 = vpop.f32.mrf.mxu0
        %v409 = vpop.f32.mrf.mxu0
        %v410 = vadd.f32 0.0, %v409
        %v411 = vpop.f32.mrf.mxu0
        %412 = vmatprep.mubr.bf16.mxu0 0
        %413 = vmatmul.mubr.bf16.gmra.mxu0 %v302
        %v414 = vpop.f32.mrf.mxu0
        %v415 = vadd.f32 0.0, %v414
        %v416 = vpop.f32.mrf.mxu0
        %v417 = vpop.f32.mrf.mxu0
        %v418 = vadd.f32 0.0, %v417
        %v419 = vpop.f32.mrf.mxu0
        %420 = vmatprep.mubr.bf16.mxu0 0
        %421 = vmatmul.mubr.bf16.gmra.mxu0 %v303
        %v422 = vpop.f32.mrf.mxu0
        %v423 = vadd.f32 0.0, %v422
        %v424 = vpop.f32.mrf.mxu0
        %v425 = vpop.f32.mrf.mxu0
        %v426 = vadd.f32 0.0, %v425
        %v427 = vpop.f32.mrf.mxu0
        %428 = vmatprep.mubr.bf16.mxu0 0
        %429 = vmatmul.mubr.bf16.gmra.mxu0 %v304
        %v430 = vpop.f32.mrf.mxu0
        %v431 = vadd.f32 0.0, %v430
        %v432 = vpop.f32.mrf.mxu0
        %v433 = vpop.f32.mrf.mxu0
        %v434 = vadd.f32 0.0, %v433
        %v435 = vpop.f32.mrf.mxu0
        %436 = vmatprep.mubr.bf16.mxu0 0
        %437 = vmatmul.mubr.bf16.gmra.mxu0 %v305
        %v438 = vpop.f32.mrf.mxu0
        %v439 = vadd.f32 0.0, %v438
        %v440 = vpop.f32.mrf.mxu0
        %v441 = vpop.f32.mrf.mxu0
        %v442 = vadd.f32 0.0, %v441
        %v443 = vpop.f32.mrf.mxu0
        %444 = vmatprep.mubr.bf16.mxu0 0
        %445 = vmatmul.mubr.bf16.gmra.mxu0 %v306
        %v446 = vpop.f32.mrf.mxu0
        %v447 = vadd.f32 0.0, %v446
        %v448 = vpop.f32.mrf.mxu0
        %v449 = vpop.f32.mrf.mxu0
        %v450 = vadd.f32 0.0, %v449
        %v451 = vpop.f32.mrf.mxu0
        %452 = vmatprep.mubr.bf16.mxu0 0
        %453 = vmatmul.mubr.bf16.gmra.mxu0 %v307
        %v454 = vpop.f32.mrf.mxu0
        %v455 = vadd.f32 0.0, %v454
        %v456 = vpop.f32.mrf.mxu0
        %v457 = vpop.f32.mrf.mxu0
        %v458 = vadd.f32 0.0, %v457
        %v459 = vpop.f32.mrf.mxu0
        %460 = vdwg.mxu0
        %v461 = vld [vmem:[%s2] sm:$0x1]
        %v463 = vlaneseq
        %v464 = vshrl.u32 %v463, 7
        %v465 = vsub.s32 0, %v464
        %v466 = vrot.slane %v461, %v465
        %v468 = vmul.f32 %v399, %v466
        %v469 = vmul.f32 %v402, %v466
        %v470 = vmul.f32 %v407, %v466
        %v471 = vmul.f32 %v410, %v466
        %v472 = vmul.f32 %v415, %v466
        %v473 = vmul.f32 %v418, %v466
        %v474 = vmul.f32 %v423, %v466
        %v475 = vmul.f32 %v426, %v466
        %v476 = vmul.f32 %v431, %v466
        %v477 = vmul.f32 %v434, %v466
        %v478 = vmul.f32 %v439, %v466
        %v479 = vmul.f32 %v442, %v466
        %v480 = vmul.f32 %v447, %v466
        %v481 = vmul.f32 %v450, %v466
        %v482 = vmul.f32 %v455, %v466
        %v483 = vmul.f32 %v458, %v466
        %v484 = vld [vmem:[%s3] sm:$0x1]
        %v486 = vlaneseq
        %v487 = vshrl.u32 %v486, 7
        %v488 = vsub.s32 0, %v487
        %v489 = vrot.slane %v484, %v488
        %v491 = vadd.f32 %v468, %v489
        %v492 = vadd.f32 %v469, %v489
        %v493 = vadd.f32 %v470, %v489
        %v494 = vadd.f32 %v471, %v489
        %v495 = vadd.f32 %v472, %v489
        %v496 = vadd.f32 %v473, %v489
        %v497 = vadd.f32 %v474, %v489
        %v498 = vadd.f32 %v475, %v489
        %v499 = vadd.f32 %v476, %v489
        %v500 = vadd.f32 %v477, %v489
        %v501 = vadd.f32 %v478, %v489
        %v502 = vadd.f32 %v479, %v489
        %v503 = vadd.f32 %v480, %v489
        %v504 = vadd.f32 %v481, %v489
        %v505 = vadd.f32 %v482, %v489
        %v506 = vadd.f32 %v483, %v489
        %v507 = vmax.f32 %v491, 0.0
        %v508 = vmax.f32 %v492, 0.0
        %v509 = vmax.f32 %v493, 0.0
        %v510 = vmax.f32 %v494, 0.0
        %v511 = vmax.f32 %v495, 0.0
        %v512 = vmax.f32 %v496, 0.0
        %v513 = vmax.f32 %v497, 0.0
        %v514 = vmax.f32 %v498, 0.0
        %v515 = vmax.f32 %v499, 0.0
        %v516 = vmax.f32 %v500, 0.0
        %v517 = vmax.f32 %v501, 0.0
        %v518 = vmax.f32 %v502, 0.0
        %v519 = vmax.f32 %v503, 0.0
        %v520 = vmax.f32 %v504, 0.0
        %v521 = vmax.f32 %v505, 0.0
        %v522 = vmax.f32 %v506, 0.0
        %v523 = vpack.c.bf16 %v508, %v507
        %v524 = vpack.c.bf16 %v510, %v509
        %v525 = vpack.c.bf16 %v512, %v511
        %v526 = vpack.c.bf16 %v514, %v513
        %v527 = vpack.c.bf16 %v516, %v515
        %v528 = vpack.c.bf16 %v518, %v517
        %v529 = vpack.c.bf16 %v520, %v519
        %v530 = vpack.c.bf16 %v522, %v521
        %v539 = vunpack.c.l.b16 %v523
        %v540 = vunpack.c.h.b16 %v523
        %v541 = vunpack.c.l.b16 %v524
        %v542 = vunpack.c.h.b16 %v524
        %v543 = vunpack.c.l.b16 %v525
        %v544 = vunpack.c.h.b16 %v525
        %v545 = vunpack.c.l.b16 %v526
        %v546 = vunpack.c.h.b16 %v526
        %v547 = vunpack.c.l.b16 %v527
        %v548 = vunpack.c.h.b16 %v527
        %v549 = vunpack.c.l.b16 %v528
        %v550 = vunpack.c.h.b16 %v528
        %v551 = vunpack.c.l.b16 %v529
        %v552 = vunpack.c.h.b16 %v529
        %v553 = vunpack.c.l.b16 %v530
        %v554 = vunpack.c.h.b16 %v530
        %v555 = vpack.c.b16 %v539, %v539
        %v556 = vpack.c.b16 %v540, %v540
        %v557 = vpack.c.b16 %v541, %v541
        %v558 = vpack.c.b16 %v542, %v542
        %v559 = vpack.c.b16 %v543, %v543
        %v560 = vpack.c.b16 %v544, %v544
        %v561 = vpack.c.b16 %v545, %v545
        %v562 = vpack.c.b16 %v546, %v546
        %v563 = vpack.c.b16 %v547, %v547
        %v564 = vpack.c.b16 %v548, %v548
        %v565 = vpack.c.b16 %v549, %v549
        %v566 = vpack.c.b16 %v550, %v550
        %v567 = vpack.c.b16 %v551, %v551
        %v568 = vpack.c.b16 %v552, %v552
        %v569 = vpack.c.b16 %v553, %v553
        %v570 = vpack.c.b16 %v554, %v554
        %vm587 = vcmask 60416
        %588 = vst.msk [vmem:[%s233] sm:$0xf] %vm587, %v555
        %589 = vst.msk [vmem:[%s233 + $0x4] sm:$0xf] %vm587, %v556
        %590 = vst.msk [vmem:[%s233 + $0x8] sm:$0xf] %vm587, %v557
        %591 = vst.msk [vmem:[%s233 + $0xc] sm:$0xf] %vm587, %v558
        %592 = vst.msk [vmem:[%s233 + $0x10] sm:$0xf] %vm587, %v559
        %593 = vst.msk [vmem:[%s233 + $0x14] sm:$0xf] %vm587, %v560
        %594 = vst.msk [vmem:[%s233 + $0x18] sm:$0xf] %vm587, %v561
        %595 = vst.msk [vmem:[%s233 + $0x1c] sm:$0xf] %vm587, %v562
        %596 = vst.msk [vmem:[%s233 + $0x20] sm:$0xf] %vm587, %v563
        %597 = vst.msk [vmem:[%s233 + $0x24] sm:$0xf] %vm587, %v564
        %598 = vst.msk [vmem:[%s233 + $0x28] sm:$0xf] %vm587, %v565
        %599 = vst.msk [vmem:[%s233 + $0x2c] sm:$0xf] %vm587, %v566
        %600 = vst.msk [vmem:[%s233 + $0x30] sm:$0xf] %vm587, %v567
        %601 = vst.msk [vmem:[%s233 + $0x34] sm:$0xf] %vm587, %v568
        %602 = vst.msk [vmem:[%s233 + $0x38] sm:$0xf] %vm587, %v569
        %603 = vst.msk [vmem:[%s233 + $0x3c] sm:$0xf] %vm587, %v570
        %s604 = smul.u32 16, %s19
        %p605 = scmp.lt.s32.totalorder %s604, 79
        %s606 = scalar_select %p605, %s604, 79
        %s607 = smul.addr %s606, 4
        %s608 = scalar_lea.vmem %s4, %s607
        // Predicated region
        $region45: #{tpu_custom_call.1} parent=35 // pred_check
          %p609 = pneg %p126
        $region46: #{tpu_custom_call.1} parent=35 // pred_check_branch
          %611 = sbr.rel (%p609) target = $region48
        $region47: #{tpu_custom_call.1} parent=35 // pred_region
          %s612 = smul.u32 16, %s19
        $region48: #{tpu_custom_call.1} parent=35 // pred_fallthru
          _
      $region36: #{tpu_custom_call.1} parent=5 // pred_fallthru
        _
      %p613 = scmp.le.s32.totalorder 2, %s14
      // Predicated region
      $region49: #{tpu_custom_call.1} parent=5 // pred_check
        %p614 = pneg %p613
      $region50: #{tpu_custom_call.1} parent=5 // pred_check_branch
        %616 = sbr.rel (%p614) target = $region52
      $region51: #{tpu_custom_call.1} parent=5 // pred_region
        %s617 = ssub.s32 %s14, 2
        // Predicated region
        $region53: #{tpu_custom_call.1} parent=51 // pred_check
          %p618 = pneg %p132
        $region54: #{tpu_custom_call.1} parent=51 // pred_check_branch
          %620 = sbr.rel (%p618) target = $region56
        $region55: #{tpu_custom_call.1} parent=51 // pred_region
          %s621 = smul.u32 16, %s20
          %p622 = scmp.lt.s32.totalorder %s621, 79
          %s623 = scalar_select %p622, %s621, 79
          %s624 = smul.addr %s623, 4
          %s625 = scalar_lea.vmem %s4, %s624
        $region56: #{tpu_custom_call.1} parent=51 // pred_fallthru
          _
      $region52: #{tpu_custom_call.1} parent=5 // pred_fallthru
        _
    $region6: #{tpu_custom_call.1} parent=1 // loop_footer
      %s18 = sadd.s32 1, %s14
    $region7: #{tpu_custom_call.1} parent=1 // loop_footer_branch
      %13 = sbr.rel target = $region3
    $region8: #{tpu_custom_call.1} parent=1 // loop_exit
      _
    %626 = vsyncpa [#allocation3], 1
    %s627 = scalar_lea.sflag [#allocation3], 1
    %628 = vsyncpa %s627, 1
    %629 = vsyncpa [#allocation5], 1

</llo_original>
